<compile_context>
chip_gen: v7x
topology: tpu7x:2x2x1
jax: 0.10.0
libtpu: 0.0.40
codegen_flags: <defaults>
</compile_context>

<pallas_src>
import jax
import jax.numpy as jnp
from jax.experimental import pallas as pl
from jax.experimental.pallas import tpu as pltpu


# ---------------------------------------------------------------------------
# Pallas kernel: elementwise add (get_signal hot path of the Add processor).
# ---------------------------------------------------------------------------
_LANES = 1024                     # lane-dense block width (multiple of 128)
_BLOCK_ROWS = 256                 # sublane rows per block (multiple of 8)
_TILE_ELEMS = _LANES * _BLOCK_ROWS  # 262144 f32 = 1 MiB per block


def _add_kernel(a_ref, b_ref, o_ref):
    o_ref[...] = a_ref[...] + b_ref[...]


def _add_single_block(a: jax.Array, b: jax.Array) -> jax.Array:
    """Small inputs: one ungridded pallas_call, whole-array block (no grid
    overhead, one DMA per tensor)."""
    return pl.pallas_call(
        _add_kernel,
        out_shape=jax.ShapeDtypeStruct(a.shape, a.dtype),
    )(a, b)


def _add_tiled(a_flat: jax.Array, b_flat: jax.Array, n: int) -> jax.Array:
    """Large inputs: lane/sublane-dense slab, 1 MiB blocks, pipelined grid."""
    pad = (-n) % _TILE_ELEMS
    if pad:
        a_flat = jnp.pad(a_flat, (0, pad))
        b_flat = jnp.pad(b_flat, (0, pad))
    rows = (n + pad) // _LANES
    a2 = a_flat.reshape(rows, _LANES)
    b2 = b_flat.reshape(rows, _LANES)

    grid = (rows // _BLOCK_ROWS,)
    out2 = pl.pallas_call(
        _add_kernel,
        out_shape=jax.ShapeDtypeStruct((rows, _LANES), a2.dtype),
        grid=grid,
        in_specs=[
            pl.BlockSpec((_BLOCK_ROWS, _LANES), lambda i: (i, 0)),
            pl.BlockSpec((_BLOCK_ROWS, _LANES), lambda i: (i, 0)),
        ],
        out_specs=pl.BlockSpec((_BLOCK_ROWS, _LANES), lambda i: (i, 0)),
        compiler_params=pltpu.CompilerParams(
            dimension_semantics=("parallel",),
        ),
    )(a2, b2)
    return out2.reshape(-1)[:n]


def pallas_add_signal(signal_one: jax.Array, signal_two: jax.Array) -> jax.Array:
    """Elementwise add of two signal tensors on TPU via Pallas."""
    assert signal_one.shape == signal_two.shape
    assert signal_one.dtype == signal_two.dtype
    shape = signal_one.shape
    n = signal_one.size
    if n < _TILE_ELEMS:
        # Tiny signals: grid / padding overhead would dominate.
        return _add_single_block(signal_one, signal_two)
    flat = _add_tiled(signal_one.reshape(-1), signal_two.reshape(-1), n)
    return flat.reshape(shape)


# ---------------------------------------------------------------------------
# Processor base class (JAX mirror of the PyTorch abstract base class).
# ---------------------------------------------------------------------------
class Processor:
    """Abstract base class for signal processors (JAX mirror)."""

    def __call__(self, *args, **kwargs):
        return self.forward(*args, **kwargs)

    def forward(self, *args, **kwargs):
        """Convert input tensors arguments into a signal tensor."""
        controls = self.get_controls(*args, **kwargs)
        signal = self.get_signal(**controls)
        return signal

    def get_controls(self, *args, **kwargs) -> dict:
        raise NotImplementedError

    def get_signal(self, *args, **kwargs):
        raise NotImplementedError


class Add(Processor):
    """Canonical concrete Processor: sums two signals (Pallas hot path)."""

    def __init__(self):
        super().__init__()

    def get_controls(self, signal_one, signal_two) -> dict:
        return {"signal_one": signal_one, "signal_two": signal_two}

    def get_signal(self, signal_one, signal_two):
        return pallas_add_signal(signal_one, signal_two)


# ---------------------------------------------------------------------------
# Demo / correctness check
# ---------------------------------------------------------------------------
if __name__ == "__main__":
    key = jax.random.PRNGKey(0)
    k1, k2, k3, k4 = jax.random.split(key, 4)

    processor = Add()

    # Small demo [batch, n_samples] — exercises the single-block Pallas path.
    B, T = 2, 1024
    s1 = jax.random.normal(k1, (B, T), dtype=jnp.float32)
    s2 = jax.random.normal(k2, (B, T), dtype=jnp.float32)
    out_small = jax.block_until_ready(processor(s1, s2))
    ref_small = s1 + s2
    assert out_small.shape == (B, T)
    assert out_small.dtype == jnp.float32
    assert jnp.allclose(out_small, ref_small, atol=1e-6, rtol=1e-6)

    # Larger, unaligned signal — exercises the tiled (padded, lane-dense) path.
    B2, T2 = 3, 100_000
    t1 = jax.random.normal(k3, (B2, T2), dtype=jnp.float32)
    t2 = jax.random.normal(k4, (B2, T2), dtype=jnp.float32)
    out_big = jax.block_until_ready(processor(t1, t2))
    ref_big = t1 + t2
    assert out_big.shape == (B2, T2)
    assert jnp.allclose(out_big, ref_big, atol=1e-6, rtol=1e-6)

    print("KERNEL_OK")
</pallas_src>

<mosaic_0001>
module attributes {stable_mosaic.version = 11 : i64} {
  func.func @_add_kernel(%arg0: memref<2x1024xf32, #tpu.memory_space<vmem>>, %arg1: memref<2x1024xf32, #tpu.memory_space<vmem>>, %arg2: memref<2x1024xf32, #tpu.memory_space<vmem>>) attributes {dimension_semantics = [], scalar_prefetch = 0 : i64, scratch_operands = 0 : i64, tpu.core_type = #tpu.core_type<tc>} {
    %c0 = arith.constant 0 : index
    %c0_0 = arith.constant 0 : index
    %0 = vector.load %arg0[%c0, %c0_0] : memref<2x1024xf32, #tpu.memory_space<vmem>>, vector<2x1024xf32>
    %c0_1 = arith.constant 0 : index
    %c0_2 = arith.constant 0 : index
    %1 = vector.load %arg1[%c0_1, %c0_2] : memref<2x1024xf32, #tpu.memory_space<vmem>>, vector<2x1024xf32>
    %2 = arith.addf %0, %1 : vector<2x1024xf32>
    %c0_3 = arith.constant 0 : index
    %c0_4 = arith.constant 0 : index
    %3 = vector.load %arg2[%c0_3, %c0_4] : memref<2x1024xf32, #tpu.memory_space<vmem>>, vector<2x1024xf32>
    tpu.vector_store %arg2[%c0_3, %c0_4], %2 {strides = array<i32>} : memref<2x1024xf32, #tpu.memory_space<vmem>>, vector<2x1024xf32>,
    return
  }
}

</mosaic_0001>

<llo_original>
// kernel: tpu_custom_call.1
$region0: #{tpu_custom_call.1}
  #allocation0 [shape = 'u32[]', space=smem, size = 0x4, offset = 0x4, fixed_abs, tag = 'smem constant byte address 0x4 - core index']
  #allocation1 [shape = 'u32[144,128]{1,0:T(1,128)}', space=vmem, size = 0x12000, scoped, tag = 'internal scratch']
  %s0 = inlined_call_operand.hbm [shape: f32[2,1024], index: 0, kind: input, shape index: {}]
  %s1 = inlined_call_operand.hbm [shape: f32[2,1024], index: 1, kind: input, shape index: {}]
  %s2 = inlined_call_operand.hbm [shape: f32[2,1024], index: 2, kind: output, shape index: {}]
  %s3 = sld [smem:[#allocation0]]
  $region26: #{tpu_custom_call.1} parent=0
    _
  %s5 = ssub.s32 1, %s3
  %s6 = scalar_select 0, %s5, %s3
  $region1: #{tpu_custom_call.1} parent=0
    #allocation2 [shape = 'u8[8192]{0}', space=vmem, size = 0x2000, scoped, tag = 'input window, operand 0, single buffered']
    #allocation3 [shape = 's32[1]{0}', space=sflag, size = 0x4, scoped, tag = 'scoped memory for tpu_custom_call.1']
    #allocation4 [shape = 's32[1]{0}', space=sflag, size = 0x4, scoped, tag = 'scoped memory for tpu_custom_call.1']
    #allocation5 [shape = 'u8[8192]{0}', space=vmem, size = 0x2000, scoped, tag = 'input window, operand 1, single buffered']
    #allocation6 [shape = 's32[1]{0}', space=sflag, size = 0x4, scoped, tag = 'scoped memory for tpu_custom_call.1']
    #allocation7 [shape = 'u8[8192]{0}', space=vmem, size = 0x2000, scoped, tag = 'output window, operand 0, single buffered']
    %7 = vsyncpa [#allocation3], 0
    %8 = vsyncpa [#allocation6], 0
    %9 = vsyncpa [#allocation4], 0
    // Predicated region
    $region2: #{tpu_custom_call.1} parent=1 // pred_check
      _
    $region3: #{tpu_custom_call.1} parent=1 // pred_check_branch
      %11 = sbr.rel (0) target = $region5
    $region4: #{tpu_custom_call.1} parent=1 // pred_region
      %s13 = ssub.s32 256, 256
      %14 = vsyncadd [#allocation3], %s13
      %s16 = sshll.u32 [#allocation2], 4
      %s17 = int_to_ptr.vmem [resolvable:$true] %s16
      %19 = dma.hbm_to_vmem [thread:$0]  %s0, 256, %s17, [#allocation3]
    $region5: #{tpu_custom_call.1} parent=1 // pred_fallthru
      _
    // Predicated region
    $region6: #{tpu_custom_call.1} parent=1 // pred_check
      _
    $region7: #{tpu_custom_call.1} parent=1 // pred_check_branch
      %21 = sbr.rel (0) target = $region9
    $region8: #{tpu_custom_call.1} parent=1 // pred_region
      %s23 = ssub.s32 256, 256
      %24 = vsyncadd [#allocation6], %s23
      %s26 = sshll.u32 [#allocation5], 4
      %s27 = int_to_ptr.vmem [resolvable:$true] %s26
      %29 = dma.hbm_to_vmem [thread:$0]  %s1, 256, %s27, [#allocation6]
    $region9: #{tpu_custom_call.1} parent=1 // pred_fallthru
      _
    // Predicated region
    $region10: #{tpu_custom_call.1} parent=1 // pred_check
      _
    $region11: #{tpu_custom_call.1} parent=1 // pred_check_branch
      %31 = sbr.rel (0) target = $region13
    $region12: #{tpu_custom_call.1} parent=1 // pred_region
      %32 = dma.done [#allocation3], 256
    $region13: #{tpu_custom_call.1} parent=1 // pred_fallthru
      _
    // Predicated region
    $region14: #{tpu_custom_call.1} parent=1 // pred_check
      _
    $region15: #{tpu_custom_call.1} parent=1 // pred_check_branch
      %34 = sbr.rel (0) target = $region17
    $region16: #{tpu_custom_call.1} parent=1 // pred_region
      %35 = dma.done [#allocation6], 256
    $region17: #{tpu_custom_call.1} parent=1 // pred_fallthru
      _
    %v36 = vld [vmem:[#allocation2] sm:$0xff]
    %v37 = vld [vmem:[#allocation2 + $0x8] sm:$0xff]
    %v38 = vld [vmem:[#allocation5] sm:$0xff]
    %v39 = vld [vmem:[#allocation5 + $0x8] sm:$0xff]
    %v40 = vadd.f32 %v36, %v38
    %v41 = vadd.f32 %v37, %v39
    %42 = vst [vmem:[#allocation7] sm:$0xff] %v40
    %43 = vst [vmem:[#allocation7 + $0x8] sm:$0xff] %v41
    // Predicated region
    $region18: #{tpu_custom_call.1} parent=1 // pred_check
      _
    $region19: #{tpu_custom_call.1} parent=1 // pred_check_branch
      %45 = sbr.rel (0) target = $region21
    $region20: #{tpu_custom_call.1} parent=1 // pred_region
      %s47 = ssub.s32 256, 256
      %48 = vsyncadd [#allocation4], %s47
      %s50 = sshll.u32 [#allocation7], 4
      %s51 = int_to_ptr.vmem [resolvable:$true] %s50
      %53 = dma.vmem_to_hbm [thread:$0]  %s51, 256, %s2, [#allocation4]
    $region21: #{tpu_custom_call.1} parent=1 // pred_fallthru
      _
    // Predicated region
    $region22: #{tpu_custom_call.1} parent=1 // pred_check
      _
    $region23: #{tpu_custom_call.1} parent=1 // pred_check_branch
      %55 = sbr.rel (0) target = $region25
    $region24: #{tpu_custom_call.1} parent=1 // pred_region
      %56 = dma.done [#allocation4], 256
    $region25: #{tpu_custom_call.1} parent=1 // pred_fallthru
      _
    %57 = vsyncpa [#allocation3], 1
    %58 = vsyncpa [#allocation6], 1
    %59 = vsyncpa [#allocation4], 1

</llo_original>
